<compile_context>
chip_gen: v7x
topology: tpu7x:2x2x1
jax: 0.10.0
libtpu: 0.0.40
codegen_flags: <defaults>
</compile_context>

<pallas_src>
import math
import functools

import jax
import jax.numpy as jnp
from jax.experimental import pallas as pl
from jax.experimental.pallas import tpu as pltpu


_LANE = 128  # TPU vreg lane width


def _gaussian_taps_1d(kernel_size: int, sigma: float):
    """Normalized 1D gaussian taps: outer(taps, taps) == the module's normalized 2D kernel."""
    mean = (kernel_size - 1) / 2.0
    g = [math.exp(-(((i - mean) / sigma) ** 2) / 2.0) for i in range(kernel_size)]
    s = sum(g)
    return tuple(v / s for v in g)


def make_gaussian_weight(channels: int, kernel_size: int, sigma: float):
    """Replicates GaussianSmoothing.__init__ (dim=2) weight construction, shape (C, K, K).

    Used only for the plain-JAX reference check in __main__ (the Pallas kernel folds the
    taps into constants).
    """
    ii, jj = jnp.meshgrid(
        jnp.arange(kernel_size, dtype=jnp.float32),
        jnp.arange(kernel_size, dtype=jnp.float32),
        indexing="ij",
    )
    mean = (kernel_size - 1) / 2.0
    c = 1.0 / (sigma * math.sqrt(2.0 * math.pi))
    kernel = (c * jnp.exp(-(((ii - mean) / sigma) ** 2) / 2.0)) * (
        c * jnp.exp(-(((jj - mean) / sigma) ** 2) / 2.0)
    )
    kernel = kernel / jnp.sum(kernel)
    return jnp.broadcast_to(kernel[None, :, :], (channels, kernel_size, kernel_size))


def _gauss2d_cl_kernel(x_ref, o_ref, *, taps, Ho: int, Wo: int):
    """One 128-lane chunk of the channels-last slab.

    x_ref: (H, W, 128)   o_ref: (Ho, Wo, 128)
    Separable gaussian: 1D pass along H (leading dim), then 1D pass along W (sublanes).
    Lanes (the padded N*C axis) are never shifted.
    """
    K = len(taps)

    # Pass 1: filter along H.  Shifted reads come straight from the VMEM ref
    # (leading-dim offsets -> cheap vld, no lane/sublane permutes).
    acc = taps[0] * x_ref[pl.ds(0, Ho), :, :].astype(jnp.float32)
    for ki in range(1, K):
        acc = acc + taps[ki] * x_ref[pl.ds(ki, Ho), :, :].astype(jnp.float32)

    # Pass 2: filter along W (sublane axis).  f32 accumulation everywhere; for f32 inputs
    # the cast above is a no-op (bf16 inputs could keep the mul in bf16 on v6e/v7x).
    out = taps[0] * acc[:, 0:Wo, :]
    for kj in range(1, K):
        out = out + taps[kj] * acc[:, kj:kj + Wo, :]

    o_ref[...] = out.astype(o_ref.dtype)


def gaussian_smoothing_2d(x, kernel_size: int, sigma: float):
    """Depthwise valid 2D gaussian smoothing.  x: (N, C, H, W) -> (N, C, H-K+1, W-K+1)."""
    N, C, H, W = x.shape
    K = int(kernel_size)
    Ho, Wo = H - K + 1, W - K + 1
    taps = _gaussian_taps_1d(K, float(sigma))

    P = N * C
    P_pad = ((P + _LANE - 1) // _LANE) * _LANE
    itemsize = jnp.dtype(x.dtype).itemsize

    # Channels-last, lane-dense slab: (H, W, N*C) padded to a multiple of 128 lanes.
    x_cl = jnp.transpose(x, (2, 3, 0, 1)).reshape(H, W, P)
    if P_pad != P:
        x_cl = jnp.pad(x_cl, ((0, 0), (0, 0), (0, P_pad - P)))

    kernel = functools.partial(_gauss2d_cl_kernel, taps=taps, Ho=Ho, Wo=Wo)

    out_cl = pl.pallas_call(
        kernel,
        out_shape=jax.ShapeDtypeStruct((Ho, Wo, P_pad), x.dtype),
        grid_spec=pltpu.PrefetchScalarGridSpec(
            num_scalar_prefetch=0,
            grid=(P_pad // _LANE,),
            in_specs=[pl.BlockSpec((H, W, _LANE), lambda p: (0, 0, p))],
            out_specs=pl.BlockSpec((Ho, Wo, _LANE), lambda p: (0, 0, p)),
        ),
        compiler_params=pltpu.CompilerParams(
            dimension_semantics=("parallel",),          # megacore: shard lane chunks
            vmem_limit_bytes=32 * 1024 * 1024,          # explicit, safe on v5e/v6e/v7x
        ),
        cost_estimate=pl.CostEstimate(
            flops=2 * K * (Ho * W + Ho * Wo) * P,        # separable: ~2K MACs / output
            transcendentals=0,
            bytes_accessed=itemsize * (H * W * P_pad + Ho * Wo * P_pad),
        ),
    )(x_cl)

    out = out_cl[:, :, :P].reshape(Ho, Wo, N, C)
    return jnp.transpose(out, (2, 3, 0, 1))


class GaussianSmoothing:
    """Pallas-backed equivalent of the PyTorch GaussianSmoothing module (dim=2)."""

    def __init__(self, channels, kernel_size, sigma, dim=2):
        if dim != 2:
            raise NotImplementedError("Only dim=2 is implemented.")  # TODO(synk): 1D/3D paths
        self.channels = int(channels)
        self.kernel_size = int(kernel_size)
        self.sigma = float(sigma)

    def __call__(self, x):
        assert x.shape[1] == self.channels
        return gaussian_smoothing_2d(x, self.kernel_size, self.sigma)


if __name__ == "__main__":
    # Module config (dim=2 default): channels=4, kernel_size=3, sigma=1.0
    channels, kernel_size, sigma = 4, 3, 1.0
    N, H, W = 2, 16, 16

    key = jax.random.PRNGKey(0)
    x = jax.random.normal(key, (N, channels, H, W), dtype=jnp.float32)

    smoother = GaussianSmoothing(channels, kernel_size, sigma, dim=2)
    out = jax.block_until_ready(smoother(x))

    # Reference: plain-JAX depthwise conv with the exact PyTorch-constructed weight.
    weight = make_gaussian_weight(channels, kernel_size, sigma)
    ref = jax.lax.conv_general_dilated(
        x, weight[:, None, :, :],
        window_strides=(1, 1), padding="VALID",
        dimension_numbers=("NCHW", "OIHW", "NCHW"),
        feature_group_count=channels,
    )
    assert out.shape == (N, channels, H - kernel_size + 1, W - kernel_size + 1)
    assert jnp.allclose(out, ref, atol=1e-5, rtol=1e-5)

    print("KERNEL_OK")
</pallas_src>

<mosaic_0001>
module attributes {stable_mosaic.version = 11 : i64} {
  func.func @_gauss2d_cl_kernel(%arg0: i32, %arg1: memref<16x16x128xf32, #tpu.memory_space<vmem>>, %arg2: memref<14x14x128xf32, #tpu.memory_space<vmem>>) attributes {dimension_semantics = [#tpu.dimension_semantics<parallel>], iteration_bounds = array<i64: 1>, scalar_prefetch = 0 : i64, scratch_operands = 0 : i64, tpu.core_type = #tpu.core_type<tc>, window_params = [{transform_indices = @transform_0, window_bounds = array<i64: 16, 16, 128>}, {transform_indices = @transform_1, window_bounds = array<i64: 14, 14, 128>}]} {
    %c0 = arith.constant 0 : index
    %c0_0 = arith.constant 0 : index
    %c0_1 = arith.constant 0 : index
    %0 = vector.load %arg1[%c0, %c0_0, %c0_1] : memref<16x16x128xf32, #tpu.memory_space<vmem>>, vector<14x16x128xf32>
    %cst = arith.constant 0.274068624 : f32
    %1 = vector.broadcast %cst : f32 to vector<14x16x128xf32>
    %2 = arith.mulf %1, %0 : vector<14x16x128xf32>
    %c1 = arith.constant 1 : index
    %c0_2 = arith.constant 0 : index
    %c0_3 = arith.constant 0 : index
    %3 = vector.load %arg1[%c1, %c0_2, %c0_3] : memref<16x16x128xf32, #tpu.memory_space<vmem>>, vector<14x16x128xf32>
    %cst_4 = arith.constant 0.451862752 : f32
    %4 = vector.broadcast %cst_4 : f32 to vector<14x16x128xf32>
    %5 = arith.mulf %4, %3 : vector<14x16x128xf32>
    %6 = arith.addf %2, %5 : vector<14x16x128xf32>
    %c2 = arith.constant 2 : index
    %c0_5 = arith.constant 0 : index
    %c0_6 = arith.constant 0 : index
    %7 = vector.load %arg1[%c2, %c0_5, %c0_6] : memref<16x16x128xf32, #tpu.memory_space<vmem>>, vector<14x16x128xf32>
    %cst_7 = arith.constant 0.274068624 : f32
    %8 = vector.broadcast %cst_7 : f32 to vector<14x16x128xf32>
    %9 = arith.mulf %8, %7 : vector<14x16x128xf32>
    %10 = arith.addf %6, %9 : vector<14x16x128xf32>
    %11 = vector.extract_strided_slice %10 {offsets = [0, 0, 0], sizes = [14, 14, 128], strides = [1, 1, 1]} : vector<14x16x128xf32> to vector<14x14x128xf32>
    %cst_8 = arith.constant 0.274068624 : f32
    %12 = vector.broadcast %cst_8 : f32 to vector<14x14x128xf32>
    %13 = arith.mulf %12, %11 : vector<14x14x128xf32>
    %14 = vector.extract_strided_slice %10 {offsets = [0, 1, 0], sizes = [14, 14, 128], strides = [1, 1, 1]} : vector<14x16x128xf32> to vector<14x14x128xf32>
    %cst_9 = arith.constant 0.451862752 : f32
    %15 = vector.broadcast %cst_9 : f32 to vector<14x14x128xf32>
    %16 = arith.mulf %15, %14 : vector<14x14x128xf32>
    %17 = arith.addf %13, %16 : vector<14x14x128xf32>
    %18 = vector.extract_strided_slice %10 {offsets = [0, 2, 0], sizes = [14, 14, 128], strides = [1, 1, 1]} : vector<14x16x128xf32> to vector<14x14x128xf32>
    %cst_10 = arith.constant 0.274068624 : f32
    %19 = vector.broadcast %cst_10 : f32 to vector<14x14x128xf32>
    %20 = arith.mulf %19, %18 : vector<14x14x128xf32>
    %21 = arith.addf %17, %20 : vector<14x14x128xf32>
    %c0_11 = arith.constant 0 : index
    %c0_12 = arith.constant 0 : index
    %c0_13 = arith.constant 0 : index
    %22 = vector.load %arg2[%c0_11, %c0_12, %c0_13] : memref<14x14x128xf32, #tpu.memory_space<vmem>>, vector<14x14x128xf32>
    tpu.vector_store %arg2[%c0_11, %c0_12, %c0_13], %21 {strides = array<i32>} : memref<14x14x128xf32, #tpu.memory_space<vmem>>, vector<14x14x128xf32>,
    return
  }
  func.func @transform_0(%arg0: i32) -> (i32, i32, i32) {
    %c0_i32 = arith.constant 0 : i32
    %c0_i32_0 = arith.constant 0 : i32
    %c0_i32_1 = arith.constant 0 : i32
    return %c0_i32, %c0_i32_0, %arg0 : i32, i32, i32
  }
  func.func @transform_1(%arg0: i32) -> (i32, i32, i32) {
    %c0_i32 = arith.constant 0 : i32
    %c0_i32_0 = arith.constant 0 : i32
    %c0_i32_1 = arith.constant 0 : i32
    return %c0_i32, %c0_i32_0, %arg0 : i32, i32, i32
  }
}

</mosaic_0001>

<llo_original>
// kernel: tpu_custom_call.1
$region0: #{tpu_custom_call.1}
  #allocation0 [shape = 'u32[]', space=smem, size = 0x4, offset = 0x4, fixed_abs, tag = 'smem constant byte address 0x4 - core index']
  #allocation1 [shape = 'u32[144,128]{1,0:T(1,128)}', space=vmem, size = 0x12000, scoped, tag = 'internal scratch']
  %s0 = inlined_call_operand.hbm [shape: f32[16,16,128], index: 0, kind: input, shape index: {}]
  %s1 = inlined_call_operand.hbm [shape: f32[14,14,128], index: 1, kind: output, shape index: {}]
  %s2 = sld [smem:[#allocation0]]
  $region18: #{tpu_custom_call.1} parent=0
    _
  %s4 = ssub.s32 1, %s2
  %s5 = scalar_select 0, %s4, %s2
  $region1: #{tpu_custom_call.1} parent=0
    #allocation2 [shape = 'u8[131072]{0}', space=vmem, size = 0x20000, scoped, tag = 'input window, operand 0, single buffered']
    #allocation3 [shape = 's32[1]{0}', space=sflag, size = 0x4, scoped, tag = 'scoped memory for tpu_custom_call.1']
    #allocation4 [shape = 's32[1]{0}', space=sflag, size = 0x4, scoped, tag = 'scoped memory for tpu_custom_call.1']
    #allocation5 [shape = 'u8[114688]{0}', space=vmem, size = 0x1c000, scoped, tag = 'output window, operand 0, single buffered']
    %6 = vsyncpa [#allocation3], 0
    %7 = vsyncpa [#allocation4], 0
    // Predicated region
    $region2: #{tpu_custom_call.1} parent=1 // pred_check
      _
    $region3: #{tpu_custom_call.1} parent=1 // pred_check_branch
      %9 = sbr.rel (0) target = $region5
    $region4: #{tpu_custom_call.1} parent=1 // pred_region
      %s11 = ssub.s32 4096, 4096
      %12 = vsyncadd [#allocation3], %s11
      %s13 = sshll.u32 [#allocation2], 4
      %s14 = int_to_ptr.vmem [resolvable:$true] %s13
      %19 = dma.hbm_to_vmem [thread:$0]  %s0, 4096, %s14, [#allocation3], 128, 128, 8
    $region5: #{tpu_custom_call.1} parent=1 // pred_fallthru
      _
    // Predicated region
    $region6: #{tpu_custom_call.1} parent=1 // pred_check
      _
    $region7: #{tpu_custom_call.1} parent=1 // pred_check_branch
      %21 = sbr.rel (0) target = $region9
    $region8: #{tpu_custom_call.1} parent=1 // pred_region
      %22 = dma.done [#allocation3], 4096
    $region9: #{tpu_custom_call.1} parent=1 // pred_fallthru
      _
    %v23 = vld [vmem:[#allocation2] sm:$0xff]
    %v24 = vld [vmem:[#allocation2 + $0x8] sm:$0xff]
    %v25 = vld [vmem:[#allocation2 + $0x10] sm:$0xff]
    %v26 = vld [vmem:[#allocation2 + $0x18] sm:$0xff]
    %v27 = vld [vmem:[#allocation2 + $0x20] sm:$0xff]
    %v28 = vld [vmem:[#allocation2 + $0x28] sm:$0xff]
    %v29 = vld [vmem:[#allocation2 + $0x30] sm:$0xff]
    %v30 = vld [vmem:[#allocation2 + $0x38] sm:$0xff]
    %v31 = vld [vmem:[#allocation2 + $0x40] sm:$0xff]
    %v32 = vld [vmem:[#allocation2 + $0x48] sm:$0xff]
    %v33 = vld [vmem:[#allocation2 + $0x50] sm:$0xff]
    %v34 = vld [vmem:[#allocation2 + $0x58] sm:$0xff]
    %v35 = vld [vmem:[#allocation2 + $0x60] sm:$0xff]
    %v36 = vld [vmem:[#allocation2 + $0x68] sm:$0xff]
    %v37 = vld [vmem:[#allocation2 + $0x70] sm:$0xff]
    %v38 = vld [vmem:[#allocation2 + $0x78] sm:$0xff]
    %v39 = vld [vmem:[#allocation2 + $0x80] sm:$0xff]
    %v40 = vld [vmem:[#allocation2 + $0x88] sm:$0xff]
    %v41 = vld [vmem:[#allocation2 + $0x90] sm:$0xff]
    %v42 = vld [vmem:[#allocation2 + $0x98] sm:$0xff]
    %v43 = vld [vmem:[#allocation2 + $0xa0] sm:$0xff]
    %v44 = vld [vmem:[#allocation2 + $0xa8] sm:$0xff]
    %v45 = vld [vmem:[#allocation2 + $0xb0] sm:$0xff]
    %v46 = vld [vmem:[#allocation2 + $0xb8] sm:$0xff]
    %v47 = vld [vmem:[#allocation2 + $0xc0] sm:$0xff]
    %v48 = vld [vmem:[#allocation2 + $0xc8] sm:$0xff]
    %v49 = vld [vmem:[#allocation2 + $0xd0] sm:$0xff]
    %v50 = vld [vmem:[#allocation2 + $0xd8] sm:$0xff]
    %v51 = vmul.f32 %v23, 0.27406862
    %v52 = vmul.f32 %v24, 0.27406862
    %v53 = vmul.f32 %v25, 0.27406862
    %v54 = vmul.f32 %v26, 0.27406862
    %v55 = vmul.f32 %v27, 0.27406862
    %v56 = vmul.f32 %v28, 0.27406862
    %v57 = vmul.f32 %v29, 0.27406862
    %v58 = vmul.f32 %v30, 0.27406862
    %v59 = vmul.f32 %v31, 0.27406862
    %v60 = vmul.f32 %v32, 0.27406862
    %v61 = vmul.f32 %v33, 0.27406862
    %v62 = vmul.f32 %v34, 0.27406862
    %v63 = vmul.f32 %v35, 0.27406862
    %v64 = vmul.f32 %v36, 0.27406862
    %v65 = vmul.f32 %v37, 0.27406862
    %v66 = vmul.f32 %v38, 0.27406862
    %v67 = vmul.f32 %v39, 0.27406862
    %v68 = vmul.f32 %v40, 0.27406862
    %v69 = vmul.f32 %v41, 0.27406862
    %v70 = vmul.f32 %v42, 0.27406862
    %v71 = vmul.f32 %v43, 0.27406862
    %v72 = vmul.f32 %v44, 0.27406862
    %v73 = vmul.f32 %v45, 0.27406862
    %v74 = vmul.f32 %v46, 0.27406862
    %v75 = vmul.f32 %v47, 0.27406862
    %v76 = vmul.f32 %v48, 0.27406862
    %v77 = vmul.f32 %v49, 0.27406862
    %v78 = vmul.f32 %v50, 0.27406862
    %s79 = scalar_lea.vmem [#allocation2], 16
    %v80 = vld [vmem:[%s79] sm:$0xff]
    %v81 = vld [vmem:[%s79 + $0x8] sm:$0xff]
    %v82 = vld [vmem:[%s79 + $0x10] sm:$0xff]
    %v83 = vld [vmem:[%s79 + $0x18] sm:$0xff]
    %v84 = vld [vmem:[%s79 + $0x20] sm:$0xff]
    %v85 = vld [vmem:[%s79 + $0x28] sm:$0xff]
    %v86 = vld [vmem:[%s79 + $0x30] sm:$0xff]
    %v87 = vld [vmem:[%s79 + $0x38] sm:$0xff]
    %v88 = vld [vmem:[%s79 + $0x40] sm:$0xff]
    %v89 = vld [vmem:[%s79 + $0x48] sm:$0xff]
    %v90 = vld [vmem:[%s79 + $0x50] sm:$0xff]
    %v91 = vld [vmem:[%s79 + $0x58] sm:$0xff]
    %v92 = vld [vmem:[%s79 + $0x60] sm:$0xff]
    %v93 = vld [vmem:[%s79 + $0x68] sm:$0xff]
    %v94 = vld [vmem:[%s79 + $0x70] sm:$0xff]
    %v95 = vld [vmem:[%s79 + $0x78] sm:$0xff]
    %v96 = vld [vmem:[%s79 + $0x80] sm:$0xff]
    %v97 = vld [vmem:[%s79 + $0x88] sm:$0xff]
    %v98 = vld [vmem:[%s79 + $0x90] sm:$0xff]
    %v99 = vld [vmem:[%s79 + $0x98] sm:$0xff]
    %v100 = vld [vmem:[%s79 + $0xa0] sm:$0xff]
    %v101 = vld [vmem:[%s79 + $0xa8] sm:$0xff]
    %v102 = vld [vmem:[%s79 + $0xb0] sm:$0xff]
    %v103 = vld [vmem:[%s79 + $0xb8] sm:$0xff]
    %v104 = vld [vmem:[%s79 + $0xc0] sm:$0xff]
    %v105 = vld [vmem:[%s79 + $0xc8] sm:$0xff]
    %v106 = vld [vmem:[%s79 + $0xd0] sm:$0xff]
    %v107 = vld [vmem:[%s79 + $0xd8] sm:$0xff]
    %v108 = vmul.f32 %v80, 0.45186275
    %v109 = vmul.f32 %v81, 0.45186275
    %v110 = vmul.f32 %v82, 0.45186275
    %v111 = vmul.f32 %v83, 0.45186275
    %v112 = vmul.f32 %v84, 0.45186275
    %v113 = vmul.f32 %v85, 0.45186275
    %v114 = vmul.f32 %v86, 0.45186275
    %v115 = vmul.f32 %v87, 0.45186275
    %v116 = vmul.f32 %v88, 0.45186275
    %v117 = vmul.f32 %v89, 0.45186275
    %v118 = vmul.f32 %v90, 0.45186275
    %v119 = vmul.f32 %v91, 0.45186275
    %v120 = vmul.f32 %v92, 0.45186275
    %v121 = vmul.f32 %v93, 0.45186275
    %v122 = vmul.f32 %v94, 0.45186275
    %v123 = vmul.f32 %v95, 0.45186275
    %v124 = vmul.f32 %v96, 0.45186275
    %v125 = vmul.f32 %v97, 0.45186275
    %v126 = vmul.f32 %v98, 0.45186275
    %v127 = vmul.f32 %v99, 0.45186275
    %v128 = vmul.f32 %v100, 0.45186275
    %v129 = vmul.f32 %v101, 0.45186275
    %v130 = vmul.f32 %v102, 0.45186275
    %v131 = vmul.f32 %v103, 0.45186275
    %v132 = vmul.f32 %v104, 0.45186275
    %v133 = vmul.f32 %v105, 0.45186275
    %v134 = vmul.f32 %v106, 0.45186275
    %v135 = vmul.f32 %v107, 0.45186275
    %v136 = vadd.f32 %v51, %v108
    %v137 = vadd.f32 %v52, %v109
    %v138 = vadd.f32 %v53, %v110
    %v139 = vadd.f32 %v54, %v111
    %v140 = vadd.f32 %v55, %v112
    %v141 = vadd.f32 %v56, %v113
    %v142 = vadd.f32 %v57, %v114
    %v143 = vadd.f32 %v58, %v115
    %v144 = vadd.f32 %v59, %v116
    %v145 = vadd.f32 %v60, %v117
    %v146 = vadd.f32 %v61, %v118
    %v147 = vadd.f32 %v62, %v119
    %v148 = vadd.f32 %v63, %v120
    %v149 = vadd.f32 %v64, %v121
    %v150 = vadd.f32 %v65, %v122
    %v151 = vadd.f32 %v66, %v123
    %v152 = vadd.f32 %v67, %v124
    %v153 = vadd.f32 %v68, %v125
    %v154 = vadd.f32 %v69, %v126
    %v155 = vadd.f32 %v70, %v127
    %v156 = vadd.f32 %v71, %v128
    %v157 = vadd.f32 %v72, %v129
    %v158 = vadd.f32 %v73, %v130
    %v159 = vadd.f32 %v74, %v131
    %v160 = vadd.f32 %v75, %v132
    %v161 = vadd.f32 %v76, %v133
    %v162 = vadd.f32 %v77, %v134
    %v163 = vadd.f32 %v78, %v135
    %s164 = scalar_lea.vmem [#allocation2], 32
    %v165 = vld [vmem:[%s164] sm:$0xff]
    %v166 = vld [vmem:[%s164 + $0x8] sm:$0xff]
    %v167 = vld [vmem:[%s164 + $0x10] sm:$0xff]
    %v168 = vld [vmem:[%s164 + $0x18] sm:$0xff]
    %v169 = vld [vmem:[%s164 + $0x20] sm:$0xff]
    %v170 = vld [vmem:[%s164 + $0x28] sm:$0xff]
    %v171 = vld [vmem:[%s164 + $0x30] sm:$0xff]
    %v172 = vld [vmem:[%s164 + $0x38] sm:$0xff]
    %v173 = vld [vmem:[%s164 + $0x40] sm:$0xff]
    %v174 = vld [vmem:[%s164 + $0x48] sm:$0xff]
    %v175 = vld [vmem:[%s164 + $0x50] sm:$0xff]
    %v176 = vld [vmem:[%s164 + $0x58] sm:$0xff]
    %v177 = vld [vmem:[%s164 + $0x60] sm:$0xff]
    %v178 = vld [vmem:[%s164 + $0x68] sm:$0xff]
    %v179 = vld [vmem:[%s164 + $0x70] sm:$0xff]
    %v180 = vld [vmem:[%s164 + $0x78] sm:$0xff]
    %v181 = vld [vmem:[%s164 + $0x80] sm:$0xff]
    %v182 = vld [vmem:[%s164 + $0x88] sm:$0xff]
    %v183 = vld [vmem:[%s164 + $0x90] sm:$0xff]
    %v184 = vld [vmem:[%s164 + $0x98] sm:$0xff]
    %v185 = vld [vmem:[%s164 + $0xa0] sm:$0xff]
    %v186 = vld [vmem:[%s164 + $0xa8] sm:$0xff]
    %v187 = vld [vmem:[%s164 + $0xb0] sm:$0xff]
    %v188 = vld [vmem:[%s164 + $0xb8] sm:$0xff]
    %v189 = vld [vmem:[%s164 + $0xc0] sm:$0xff]
    %v190 = vld [vmem:[%s164 + $0xc8] sm:$0xff]
    %v191 = vld [vmem:[%s164 + $0xd0] sm:$0xff]
    %v192 = vld [vmem:[%s164 + $0xd8] sm:$0xff]
    %v193 = vmul.f32 %v165, 0.27406862
    %v194 = vmul.f32 %v166, 0.27406862
    %v195 = vmul.f32 %v167, 0.27406862
    %v196 = vmul.f32 %v168, 0.27406862
    %v197 = vmul.f32 %v169, 0.27406862
    %v198 = vmul.f32 %v170, 0.27406862
    %v199 = vmul.f32 %v171, 0.27406862
    %v200 = vmul.f32 %v172, 0.27406862
    %v201 = vmul.f32 %v173, 0.27406862
    %v202 = vmul.f32 %v174, 0.27406862
    %v203 = vmul.f32 %v175, 0.27406862
    %v204 = vmul.f32 %v176, 0.27406862
    %v205 = vmul.f32 %v177, 0.27406862
    %v206 = vmul.f32 %v178, 0.27406862
    %v207 = vmul.f32 %v179, 0.27406862
    %v208 = vmul.f32 %v180, 0.27406862
    %v209 = vmul.f32 %v181, 0.27406862
    %v210 = vmul.f32 %v182, 0.27406862
    %v211 = vmul.f32 %v183, 0.27406862
    %v212 = vmul.f32 %v184, 0.27406862
    %v213 = vmul.f32 %v185, 0.27406862
    %v214 = vmul.f32 %v186, 0.27406862
    %v215 = vmul.f32 %v187, 0.27406862
    %v216 = vmul.f32 %v188, 0.27406862
    %v217 = vmul.f32 %v189, 0.27406862
    %v218 = vmul.f32 %v190, 0.27406862
    %v219 = vmul.f32 %v191, 0.27406862
    %v220 = vmul.f32 %v192, 0.27406862
    %v221 = vadd.f32 %v136, %v193
    %v222 = vadd.f32 %v137, %v194
    %v223 = vadd.f32 %v138, %v195
    %v224 = vadd.f32 %v139, %v196
    %v225 = vadd.f32 %v140, %v197
    %v226 = vadd.f32 %v141, %v198
    %v227 = vadd.f32 %v142, %v199
    %v228 = vadd.f32 %v143, %v200
    %v229 = vadd.f32 %v144, %v201
    %v230 = vadd.f32 %v145, %v202
    %v231 = vadd.f32 %v146, %v203
    %v232 = vadd.f32 %v147, %v204
    %v233 = vadd.f32 %v148, %v205
    %v234 = vadd.f32 %v149, %v206
    %v235 = vadd.f32 %v150, %v207
    %v236 = vadd.f32 %v151, %v208
    %v237 = vadd.f32 %v152, %v209
    %v238 = vadd.f32 %v153, %v210
    %v239 = vadd.f32 %v154, %v211
    %v240 = vadd.f32 %v155, %v212
    %v241 = vadd.f32 %v156, %v213
    %v242 = vadd.f32 %v157, %v214
    %v243 = vadd.f32 %v158, %v215
    %v244 = vadd.f32 %v159, %v216
    %v245 = vadd.f32 %v160, %v217
    %v246 = vadd.f32 %v161, %v218
    %v247 = vadd.f32 %v162, %v219
    %v248 = vadd.f32 %v163, %v220
    %v249 = vmul.f32 %v221, 0.27406862
    %v250 = vmul.f32 %v222, 0.27406862
    %v251 = vmul.f32 %v223, 0.27406862
    %v252 = vmul.f32 %v224, 0.27406862
    %v253 = vmul.f32 %v225, 0.27406862
    %v254 = vmul.f32 %v226, 0.27406862
    %v255 = vmul.f32 %v227, 0.27406862
    %v256 = vmul.f32 %v228, 0.27406862
    %v257 = vmul.f32 %v229, 0.27406862
    %v258 = vmul.f32 %v230, 0.27406862
    %v259 = vmul.f32 %v231, 0.27406862
    %v260 = vmul.f32 %v232, 0.27406862
    %v261 = vmul.f32 %v233, 0.27406862
    %v262 = vmul.f32 %v234, 0.27406862
    %v263 = vmul.f32 %v235, 0.27406862
    %v264 = vmul.f32 %v236, 0.27406862
    %v265 = vmul.f32 %v237, 0.27406862
    %v266 = vmul.f32 %v238, 0.27406862
    %v267 = vmul.f32 %v239, 0.27406862
    %v268 = vmul.f32 %v240, 0.27406862
    %v269 = vmul.f32 %v241, 0.27406862
    %v270 = vmul.f32 %v242, 0.27406862
    %v271 = vmul.f32 %v243, 0.27406862
    %v272 = vmul.f32 %v244, 0.27406862
    %v273 = vmul.f32 %v245, 0.27406862
    %v274 = vmul.f32 %v246, 0.27406862
    %v275 = vmul.f32 %v247, 0.27406862
    %v276 = vmul.f32 %v248, 0.27406862
    %v277 = vmul.f32 %v221, 0.45186275
    %v278 = vmul.f32 %v222, 0.45186275
    %v279 = vmul.f32 %v223, 0.45186275
    %v280 = vmul.f32 %v224, 0.45186275
    %v281 = vmul.f32 %v225, 0.45186275
    %v282 = vmul.f32 %v226, 0.45186275
    %v283 = vmul.f32 %v227, 0.45186275
    %v284 = vmul.f32 %v228, 0.45186275
    %v285 = vmul.f32 %v229, 0.45186275
    %v286 = vmul.f32 %v230, 0.45186275
    %v287 = vmul.f32 %v231, 0.45186275
    %v288 = vmul.f32 %v232, 0.45186275
    %v289 = vmul.f32 %v233, 0.45186275
    %v290 = vmul.f32 %v234, 0.45186275
    %v291 = vmul.f32 %v235, 0.45186275
    %v292 = vmul.f32 %v236, 0.45186275
    %v293 = vmul.f32 %v237, 0.45186275
    %v294 = vmul.f32 %v238, 0.45186275
    %v295 = vmul.f32 %v239, 0.45186275
    %v296 = vmul.f32 %v240, 0.45186275
    %v297 = vmul.f32 %v241, 0.45186275
    %v298 = vmul.f32 %v242, 0.45186275
    %v299 = vmul.f32 %v243, 0.45186275
    %v300 = vmul.f32 %v244, 0.45186275
    %v301 = vmul.f32 %v245, 0.45186275
    %v302 = vmul.f32 %v246, 0.45186275
    %v303 = vmul.f32 %v247, 0.45186275
    %v304 = vmul.f32 %v248, 0.45186275
    %vm333 = vcmask 1046528
    %v334 = vrot.slane %v277, 1
    %v335 = vrot.slane %v278, 1
    %v336 = vsel %vm333, %v334, %v335
    %v337 = vrot.slane %v279, 1
    %v338 = vrot.slane %v280, 1
    %v339 = vsel %vm333, %v337, %v338
    %v340 = vrot.slane %v281, 1
    %v341 = vrot.slane %v282, 1
    %v342 = vsel %vm333, %v340, %v341
    %v343 = vrot.slane %v283, 1
    %v344 = vrot.slane %v284, 1
    %v345 = vsel %vm333, %v343, %v344
    %v346 = vrot.slane %v285, 1
    %v347 = vrot.slane %v286, 1
    %v348 = vsel %vm333, %v346, %v347
    %v349 = vrot.slane %v287, 1
    %v350 = vrot.slane %v288, 1
    %v351 = vsel %vm333, %v349, %v350
    %v352 = vrot.slane %v289, 1
    %v353 = vrot.slane %v290, 1
    %v354 = vsel %vm333, %v352, %v353
    %v355 = vrot.slane %v291, 1
    %v356 = vrot.slane %v292, 1
    %v357 = vsel %vm333, %v355, %v356
    %v358 = vrot.slane %v293, 1
    %v359 = vrot.slane %v294, 1
    %v360 = vsel %vm333, %v358, %v359
    %v361 = vrot.slane %v295, 1
    %v362 = vrot.slane %v296, 1
    %v363 = vsel %vm333, %v361, %v362
    %v364 = vrot.slane %v297, 1
    %v365 = vrot.slane %v298, 1
    %v366 = vsel %vm333, %v364, %v365
    %v367 = vrot.slane %v299, 1
    %v368 = vrot.slane %v300, 1
    %v369 = vsel %vm333, %v367, %v368
    %v370 = vrot.slane %v301, 1
    %v371 = vrot.slane %v302, 1
    %v372 = vsel %vm333, %v370, %v371
    %v373 = vrot.slane %v303, 1
    %v374 = vrot.slane %v304, 1
    %v375 = vsel %vm333, %v373, %v374
    %v404 = vadd.f32 %v249, %v336
    %v405 = vadd.f32 %v250, %v335
    %v406 = vadd.f32 %v251, %v339
    %v407 = vadd.f32 %v252, %v338
    %v408 = vadd.f32 %v253, %v342
    %v409 = vadd.f32 %v254, %v341
    %v410 = vadd.f32 %v255, %v345
    %v411 = vadd.f32 %v256, %v344
    %v412 = vadd.f32 %v257, %v348
    %v413 = vadd.f32 %v258, %v347
    %v414 = vadd.f32 %v259, %v351
    %v415 = vadd.f32 %v260, %v350
    %v416 = vadd.f32 %v261, %v354
    %v417 = vadd.f32 %v262, %v353
    %v418 = vadd.f32 %v263, %v357
    %v419 = vadd.f32 %v264, %v356
    %v420 = vadd.f32 %v265, %v360
    %v421 = vadd.f32 %v266, %v359
    %v422 = vadd.f32 %v267, %v363
    %v423 = vadd.f32 %v268, %v362
    %v424 = vadd.f32 %v269, %v366
    %v425 = vadd.f32 %v270, %v365
    %v426 = vadd.f32 %v271, %v369
    %v427 = vadd.f32 %v272, %v368
    %v428 = vadd.f32 %v273, %v372
    %v429 = vadd.f32 %v274, %v371
    %v430 = vadd.f32 %v275, %v375
    %v431 = vadd.f32 %v276, %v374
    %vm460 = vcmask 1045504
    %v461 = vrot.slane %v249, 2
    %v462 = vrot.slane %v250, 2
    %v463 = vsel %vm460, %v461, %v462
    %v464 = vrot.slane %v251, 2
    %v465 = vrot.slane %v252, 2
    %v466 = vsel %vm460, %v464, %v465
    %v467 = vrot.slane %v253, 2
    %v468 = vrot.slane %v254, 2
    %v469 = vsel %vm460, %v467, %v468
    %v470 = vrot.slane %v255, 2
    %v471 = vrot.slane %v256, 2
    %v472 = vsel %vm460, %v470, %v471
    %v473 = vrot.slane %v257, 2
    %v474 = vrot.slane %v258, 2
    %v475 = vsel %vm460, %v473, %v474
    %v476 = vrot.slane %v259, 2
    %v477 = vrot.slane %v260, 2
    %v478 = vsel %vm460, %v476, %v477
    %v479 = vrot.slane %v261, 2
    %v480 = vrot.slane %v262, 2
    %v481 = vsel %vm460, %v479, %v480
    %v482 = vrot.slane %v263, 2
    %v483 = vrot.slane %v264, 2
    %v484 = vsel %vm460, %v482, %v483
    %v485 = vrot.slane %v265, 2
    %v486 = vrot.slane %v266, 2
    %v487 = vsel %vm460, %v485, %v486
    %v488 = vrot.slane %v267, 2
    %v489 = vrot.slane %v268, 2
    %v490 = vsel %vm460, %v488, %v489
    %v491 = vrot.slane %v269, 2
    %v492 = vrot.slane %v270, 2
    %v493 = vsel %vm460, %v491, %v492
    %v494 = vrot.slane %v271, 2
    %v495 = vrot.slane %v272, 2
    %v496 = vsel %vm460, %v494, %v495
    %v497 = vrot.slane %v273, 2
    %v498 = vrot.slane %v274, 2
    %v499 = vsel %vm460, %v497, %v498
    %v500 = vrot.slane %v275, 2
    %v501 = vrot.slane %v276, 2
    %v502 = vsel %vm460, %v500, %v501
    %v531 = vadd.f32 %v404, %v463
    %v532 = vadd.f32 %v405, %v462
    %v533 = vadd.f32 %v406, %v466
    %v534 = vadd.f32 %v407, %v465
    %v535 = vadd.f32 %v408, %v469
    %v536 = vadd.f32 %v409, %v468
    %v537 = vadd.f32 %v410, %v472
    %v538 = vadd.f32 %v411, %v471
    %v539 = vadd.f32 %v412, %v475
    %v540 = vadd.f32 %v413, %v474
    %v541 = vadd.f32 %v414, %v478
    %v542 = vadd.f32 %v415, %v477
    %v543 = vadd.f32 %v416, %v481
    %v544 = vadd.f32 %v417, %v480
    %v545 = vadd.f32 %v418, %v484
    %v546 = vadd.f32 %v419, %v483
    %v547 = vadd.f32 %v420, %v487
    %v548 = vadd.f32 %v421, %v486
    %v549 = vadd.f32 %v422, %v490
    %v550 = vadd.f32 %v423, %v489
    %v551 = vadd.f32 %v424, %v493
    %v552 = vadd.f32 %v425, %v492
    %v553 = vadd.f32 %v426, %v496
    %v554 = vadd.f32 %v427, %v495
    %v555 = vadd.f32 %v428, %v499
    %v556 = vadd.f32 %v429, %v498
    %v557 = vadd.f32 %v430, %v502
    %v558 = vadd.f32 %v431, %v501
    %559 = vst [vmem:[#allocation5] sm:$0xff] %v531
    %560 = vst [vmem:[#allocation5 + $0x8] sm:$0x3f] %v532
    %561 = vst [vmem:[#allocation5 + $0x10] sm:$0xff] %v533
    %562 = vst [vmem:[#allocation5 + $0x18] sm:$0x3f] %v534
    %563 = vst [vmem:[#allocation5 + $0x20] sm:$0xff] %v535
    %564 = vst [vmem:[#allocation5 + $0x28] sm:$0x3f] %v536
    %565 = vst [vmem:[#allocation5 + $0x30] sm:$0xff] %v537
    %566 = vst [vmem:[#allocation5 + $0x38] sm:$0x3f] %v538
    %567 = vst [vmem:[#allocation5 + $0x40] sm:$0xff] %v539
    %568 = vst [vmem:[#allocation5 + $0x48] sm:$0x3f] %v540
    %569 = vst [vmem:[#allocation5 + $0x50] sm:$0xff] %v541
    %570 = vst [vmem:[#allocation5 + $0x58] sm:$0x3f] %v542
    %571 = vst [vmem:[#allocation5 + $0x60] sm:$0xff] %v543
    %572 = vst [vmem:[#allocation5 + $0x68] sm:$0x3f] %v544
    %573 = vst [vmem:[#allocation5 + $0x70] sm:$0xff] %v545
    %574 = vst [vmem:[#allocation5 + $0x78] sm:$0x3f] %v546
    %575 = vst [vmem:[#allocation5 + $0x80] sm:$0xff] %v547
    %576 = vst [vmem:[#allocation5 + $0x88] sm:$0x3f] %v548
    %577 = vst [vmem:[#allocation5 + $0x90] sm:$0xff] %v549
    %578 = vst [vmem:[#allocation5 + $0x98] sm:$0x3f] %v550
    %579 = vst [vmem:[#allocation5 + $0xa0] sm:$0xff] %v551
    %580 = vst [vmem:[#allocation5 + $0xa8] sm:$0x3f] %v552
    %581 = vst [vmem:[#allocation5 + $0xb0] sm:$0xff] %v553
    %582 = vst [vmem:[#allocation5 + $0xb8] sm:$0x3f] %v554
    %583 = vst [vmem:[#allocation5 + $0xc0] sm:$0xff] %v555
    %584 = vst [vmem:[#allocation5 + $0xc8] sm:$0x3f] %v556
    %585 = vst [vmem:[#allocation5 + $0xd0] sm:$0xff] %v557
    %586 = vst [vmem:[#allocation5 + $0xd8] sm:$0x3f] %v558
    // Predicated region
    $region10: #{tpu_custom_call.1} parent=1 // pred_check
      _
    $region11: #{tpu_custom_call.1} parent=1 // pred_check_branch
      %588 = sbr.rel (0) target = $region13
    $region12: #{tpu_custom_call.1} parent=1 // pred_region
      %s590 = ssub.s32 3584, 3584
      %591 = vsyncadd [#allocation4], %s590
      %s592 = sshll.u32 [#allocation5], 4
      %s593 = int_to_ptr.vmem [resolvable:$true] %s592
      %598 = dma.vmem_to_hbm [thread:$0]  %s593, 3584, %s1, [#allocation4], 128, 128, 8
    $region13: #{tpu_custom_call.1} parent=1 // pred_fallthru
      _
    // Predicated region
    $region14: #{tpu_custom_call.1} parent=1 // pred_check
      _
    $region15: #{tpu_custom_call.1} parent=1 // pred_check_branch
      %600 = sbr.rel (0) target = $region17
    $region16: #{tpu_custom_call.1} parent=1 // pred_region
      %601 = dma.done [#allocation4], 3584
    $region17: #{tpu_custom_call.1} parent=1 // pred_fallthru
      _
    %602 = vsyncpa [#allocation3], 1
    %603 = vsyncpa [#allocation4], 1

</llo_original>
